<compile_context>
chip_gen: v5e
topology: v5e:2x2
jax: 0.10.0
libtpu: 0.0.40
codegen_flags: <defaults>
</compile_context>

<pallas_src>
import functools

import jax
import jax.numpy as jnp
from jax.experimental import pallas as pl
from jax.experimental.pallas import tpu as pltpu

_LANES = 128  # vreg lane width == padded hidden width


def _round_up(x, m):
    return (x + m - 1) // m * m


def _critic_kernel(x_ref, w1_ref, b1_ref, w2_ref, b2_ref, w3_ref, b3_ref, o_ref):
    # fc1 + ReLU: MXU matmul with f32 accumulation, bias/ReLU on the VPU.
    h1 = jnp.dot(x_ref[...], w1_ref[...], preferred_element_type=jnp.float32)
    h1 = jnp.maximum(h1 + b1_ref[...], 0.0)                       # (TM, 128)

    # fc2 + ReLU: output features zero-padded 64 -> 128, so h2 is lane-dense.
    h2 = jnp.dot(h1, w2_ref[...], preferred_element_type=jnp.float32)
    h2 = jnp.maximum(h2 + b2_ref[...], 0.0)                       # (TM, 128)

    # fc3 (64 -> 1, zero-padded to 128): N=1 MXU matmul replaced by a VPU
    # multiply + XLU lane reduction, emitted directly in a lane-dense
    # (TM//128, 128) layout (tile row r*128 + c -> out[r, c]) so the store
    # epilogue is a handful of full `vst`s instead of TM/8 masked stores.
    rows = o_ref.shape[0]                                          # TM // 128
    h2_3d = h2.reshape(rows, _LANES, _LANES)    # leading-dim split (layout-preserving)
    out = jnp.sum(h2_3d * w3_ref[...], axis=-1)                    # (TM//128, 128)
    o_ref[...] = out + b3_ref[0]                                   # SMEM scalar bias


@functools.partial(jax.jit, static_argnames=("block_m",))
def critic_forward(state, params, *, block_m=8192):
    """state: (B, state_size) f32 -> (B, 1) f32  (== PyTorch Critic.forward).

    `params` must be in the pre-padded kernel layout produced by
    `init_critic_params` (64 -> 128 zero padding hoisted out of the forward).
    """
    B, S = state.shape
    w1, b1 = params["w1"], params["b1"]        # (S, 128),   (1, 128)
    w2, b2 = params["w2"], params["b2"]        # (128, 128), (1, 128)   zero-padded
    w3, b3 = params["w3"], params["b3"]        # (1, 128),   (1,)       zero-padded

    # Batch tile: multiple of 128 rows (lane-dense output reshape), capped at
    # block_m, and at most ceil(B/2) rows so batches > 128 rows always give
    # >= 2 grid steps for v7x's two TensorCores ("parallel" batch axis).
    block_m = _round_up(max(block_m, _LANES), _LANES)
    half = _round_up(pl.cdiv(B, 2), _LANES)
    tm = min(block_m, max(half, _LANES))
    b_pad = _round_up(B, tm)
    x = state if b_pad == B else jnp.pad(state, ((0, b_pad - B), (0, 0)))

    n_tiles = b_pad // tm
    rows = tm // _LANES

    resident = lambda i: (0, 0)  # weights/biases stay VMEM-resident across the grid

    out = pl.pallas_call(
        _critic_kernel,
        out_shape=jax.ShapeDtypeStruct((n_tiles, rows, _LANES), jnp.float32),
        grid=(n_tiles,),
        in_specs=[
            pl.BlockSpec((tm, S), lambda i: (i, 0)),               # state tile
            pl.BlockSpec((S, 128), resident),                      # w1
            pl.BlockSpec((1, 128), resident),                      # b1
            pl.BlockSpec((128, 128), resident),                    # w2 (padded)
            pl.BlockSpec((1, 128), resident),                      # b2 (padded)
            pl.BlockSpec((1, 128), resident),                      # w3 (padded row vec)
            pl.BlockSpec(memory_space=pltpu.MemorySpace.SMEM),     # b3 scalar (1,)
        ],
        # Leading grid dim squeezed: kernel sees a lane-dense (rows, 128) block
        # whose last two dims always equal the array's last two dims.
        out_specs=pl.BlockSpec((None, rows, _LANES), lambda i: (i, 0, 0)),
        compiler_params=pltpu.CompilerParams(
            dimension_semantics=("parallel",),    # megacore sharding on v7x
            vmem_limit_bytes=32 * 1024 * 1024,    # guardrail (v7x has 64 MiB VMEM)
        ),
    )(x, w1, b1, w2, b2, w3, b3)

    # (n_tiles, rows, 128) lane-dense slab -> (B, 1) column.
    return out.reshape(b_pad, 1)[:B]


def init_critic_params(key, state_size):
    """PyTorch-default-like init (U[-1/sqrt(fan_in), 1/sqrt(fan_in)]) stored in
    the kernel layout:
      * weights are (in_features, out_features) so kernels compute x @ W + b,
      * fc2/fc3 are zero-padded 64 -> 128 features ONCE here (exact: padded
        h2 columns are relu(0)=0 and padded w3 entries are 0),
      * fc3 weight is a (1, 128) row vector, its bias a (1,) SMEM scalar.
    """
    ks = jax.random.split(key, 6)

    def linear(kw, kb, fan_in, fan_out):
        bound = 1.0 / jnp.sqrt(jnp.float32(fan_in))
        w = jax.random.uniform(kw, (fan_in, fan_out), jnp.float32, -bound, bound)
        b = jax.random.uniform(kb, (1, fan_out), jnp.float32, -bound, bound)
        return w, b

    w1, b1 = linear(ks[0], ks[1], state_size, 128)
    w2, b2 = linear(ks[2], ks[3], 128, 64)
    w3, b3 = linear(ks[4], ks[5], 64, 1)           # (64, 1), (1, 1)

    pad = _LANES - 64
    return {
        "w1": w1,                                   # (S, 128)
        "b1": b1,                                   # (1, 128)
        "w2": jnp.pad(w2, ((0, 0), (0, pad))),      # (128, 128)
        "b2": jnp.pad(b2, ((0, 0), (0, pad))),      # (1, 128)
        "w3": jnp.pad(w3.T, ((0, 0), (0, pad))),    # (1, 128)
        "b3": b3.reshape(1),                        # (1,)
    }


def critic_reference(state, params):
    """Pure-JAX reference of the PyTorch forward pass (padding is exact, so the
    padded params reproduce the unpadded module)."""
    h1 = jnp.maximum(state @ params["w1"] + params["b1"], 0.0)
    h2 = jnp.maximum(h1 @ params["w2"] + params["b2"], 0.0)
    return h2 @ params["w3"].T + params["b3"]


if __name__ == "__main__":
    key = jax.random.PRNGKey(0)
    k_params, k_s1, k_s2 = jax.random.split(key, 3)

    state_size = 32
    params = init_critic_params(k_params, state_size)

    # Small demo batch (single 128-row tile, mostly padding rows sliced off).
    s1 = jax.random.normal(k_s1, (8, state_size), dtype=jnp.float32)
    out1 = jax.block_until_ready(critic_forward(s1, params))
    ref1 = critic_reference(s1, params)
    assert out1.shape == (8, 1), out1.shape
    assert jnp.allclose(out1, ref1, atol=1e-5, rtol=1e-5), "mismatch vs reference (B=8)"

    # Batch large enough to exercise the 2-step (megacore-shardable) grid.
    s2 = jax.random.normal(k_s2, (200, state_size), dtype=jnp.float32)
    out2 = jax.block_until_ready(critic_forward(s2, params))
    ref2 = critic_reference(s2, params)
    assert out2.shape == (200, 1), out2.shape
    assert jnp.allclose(out2, ref2, atol=1e-5, rtol=1e-5), "mismatch vs reference (B=200)"

    print("KERNEL_OK")
</pallas_src>

<mosaic_0001>
module attributes {stable_mosaic.version = 11 : i64} {
  func.func @_critic_kernel(%arg0: i32, %arg1: memref<128x32xf32, #tpu.memory_space<vmem>>, %arg2: memref<32x128xf32, #tpu.memory_space<vmem>>, %arg3: memref<1x128xf32, #tpu.memory_space<vmem>>, %arg4: memref<128x128xf32, #tpu.memory_space<vmem>>, %arg5: memref<1x128xf32, #tpu.memory_space<vmem>>, %arg6: memref<1x128xf32, #tpu.memory_space<vmem>>, %arg7: memref<1xf32, #tpu.memory_space<smem>>, %arg8: memref<1x1x128xf32, #tpu.memory_space<vmem>>) attributes {dimension_semantics = [#tpu.dimension_semantics<parallel>], iteration_bounds = array<i64: 1>, scalar_prefetch = 0 : i64, scratch_operands = 0 : i64, tpu.core_type = #tpu.core_type<tc>, window_params = [{transform_indices = @transform_0, window_bounds = array<i64: 128, 32>}, {pipeline_mode = #tpu.pipeline_mode<synchronous>, transform_indices = @transform_1, window_bounds = array<i64: 32, 128>}, {pipeline_mode = #tpu.pipeline_mode<synchronous>, transform_indices = @transform_2, window_bounds = array<i64: 1, 128>}, {pipeline_mode = #tpu.pipeline_mode<synchronous>, transform_indices = @transform_3, window_bounds = array<i64: 128, 128>}, {pipeline_mode = #tpu.pipeline_mode<synchronous>, transform_indices = @transform_4, window_bounds = array<i64: 1, 128>}, {pipeline_mode = #tpu.pipeline_mode<synchronous>, transform_indices = @transform_5, window_bounds = array<i64: 1, 128>}, {transform_indices = @transform_6, window_bounds = array<i64: 1>}, {transform_indices = @transform_7, window_bounds = array<i64: 1, 1, 128>}]} {
    %c0 = arith.constant 0 : index
    %c0_0 = arith.constant 0 : index
    %0 = vector.load %arg1[%c0, %c0_0] : memref<128x32xf32, #tpu.memory_space<vmem>>, vector<128x32xf32>
    %c0_1 = arith.constant 0 : index
    %c0_2 = arith.constant 0 : index
    %1 = vector.load %arg2[%c0_1, %c0_2] : memref<32x128xf32, #tpu.memory_space<vmem>>, vector<32x128xf32>
    %cst = arith.constant dense<0.000000e+00> : vector<128x128xf32>
    %2 = tpu.matmul %0, %1, %cst {dimension_numbers = #tpu.dot_dimension_numbers<[1], [0], [0], [1], [0, 0, 1, 1], [], []>} : vector<128x32xf32>, vector<32x128xf32>, vector<128x128xf32> -> vector<128x128xf32>
    %c0_3 = arith.constant 0 : index
    %c0_4 = arith.constant 0 : index
    %3 = vector.load %arg3[%c0_3, %c0_4] : memref<1x128xf32, #tpu.memory_space<vmem>>, vector<1x128xf32>
    %4 = vector.broadcast %3 : vector<1x128xf32> to vector<128x128xf32>
    %5 = arith.addf %2, %4 : vector<128x128xf32>
    %cst_5 = arith.constant 0.000000e+00 : f32
    %6 = vector.broadcast %cst_5 : f32 to vector<128x128xf32>
    %7 = arith.maximumf %5, %6 : vector<128x128xf32>
    %c0_6 = arith.constant 0 : index
    %c0_7 = arith.constant 0 : index
    %8 = vector.load %arg4[%c0_6, %c0_7] : memref<128x128xf32, #tpu.memory_space<vmem>>, vector<128x128xf32>
    %cst_8 = arith.constant dense<0.000000e+00> : vector<128x128xf32>
    %9 = tpu.matmul %7, %8, %cst_8 {dimension_numbers = #tpu.dot_dimension_numbers<[1], [0], [0], [1], [0, 0, 1, 1], [], []>} : vector<128x128xf32>, vector<128x128xf32>, vector<128x128xf32> -> vector<128x128xf32>
    %c0_9 = arith.constant 0 : index
    %c0_10 = arith.constant 0 : index
    %10 = vector.load %arg5[%c0_9, %c0_10] : memref<1x128xf32, #tpu.memory_space<vmem>>, vector<1x128xf32>
    %11 = vector.broadcast %10 : vector<1x128xf32> to vector<128x128xf32>
    %12 = arith.addf %9, %11 : vector<128x128xf32>
    %cst_11 = arith.constant 0.000000e+00 : f32
    %13 = vector.broadcast %cst_11 : f32 to vector<128x128xf32>
    %14 = arith.maximumf %12, %13 : vector<128x128xf32>
    %15 = vector.shape_cast %14 : vector<128x128xf32> to vector<1x128x128xf32>
    %c0_12 = arith.constant 0 : index
    %c0_13 = arith.constant 0 : index
    %16 = vector.load %arg6[%c0_12, %c0_13] : memref<1x128xf32, #tpu.memory_space<vmem>>, vector<1x128xf32>
    %17 = vector.shape_cast %16 : vector<1x128xf32> to vector<1x1x128xf32>
    %18 = vector.broadcast %17 : vector<1x1x128xf32> to vector<1x128x128xf32>
    %19 = arith.mulf %15, %18 : vector<1x128x128xf32>
    %cst_14 = arith.constant dense<0.000000e+00> : vector<1x128xf32>
    %20 = vector.multi_reduction <add>, %19, %cst_14 [2] : vector<1x128x128xf32> to vector<1x128xf32>
    %c0_15 = arith.constant 0 : index
    %21 = memref.load %arg7[%c0_15] : memref<1xf32, #tpu.memory_space<smem>>
    %22 = vector.broadcast %21 : f32 to vector<1x128xf32>
    %23 = arith.addf %20, %22 : vector<1x128xf32>
    %c0_16 = arith.constant 0 : index
    %c0_17 = arith.constant 0 : index
    %c0_18 = arith.constant 0 : index
    %24 = vector.load %arg8[%c0_16, %c0_17, %c0_18] : memref<1x1x128xf32, #tpu.memory_space<vmem>>, vector<1x1x128xf32>
    %25 = vector.shape_cast %24 : vector<1x1x128xf32> to vector<1x128xf32>
    %26 = vector.shape_cast %23 : vector<1x128xf32> to vector<1x1x128xf32>
    tpu.vector_store %arg8[%c0_16, %c0_17, %c0_18], %26 {strides = array<i32>} : memref<1x1x128xf32, #tpu.memory_space<vmem>>, vector<1x1x128xf32>,
    return
  }
  func.func @transform_0(%arg0: i32) -> (i32, i32) {
    %c0_i32 = arith.constant 0 : i32
    %c0_i32_0 = arith.constant 0 : i32
    return %arg0, %c0_i32 : i32, i32
  }
  func.func @transform_1(%arg0: i32) -> (i32, i32) {
    %c0_i32 = arith.constant 0 : i32
    %c0_i32_0 = arith.constant 0 : i32
    %c0_i32_1 = arith.constant 0 : i32
    return %c0_i32, %c0_i32_0 : i32, i32
  }
  func.func @transform_2(%arg0: i32) -> (i32, i32) {
    %c0_i32 = arith.constant 0 : i32
    %c0_i32_0 = arith.constant 0 : i32
    %c0_i32_1 = arith.constant 0 : i32
    return %c0_i32, %c0_i32_0 : i32, i32
  }
  func.func @transform_3(%arg0: i32) -> (i32, i32) {
    %c0_i32 = arith.constant 0 : i32
    %c0_i32_0 = arith.constant 0 : i32
    %c0_i32_1 = arith.constant 0 : i32
    return %c0_i32, %c0_i32_0 : i32, i32
  }
  func.func @transform_4(%arg0: i32) -> (i32, i32) {
    %c0_i32 = arith.constant 0 : i32
    %c0_i32_0 = arith.constant 0 : i32
    %c0_i32_1 = arith.constant 0 : i32
    return %c0_i32, %c0_i32_0 : i32, i32
  }
  func.func @transform_5(%arg0: i32) -> (i32, i32) {
    %c0_i32 = arith.constant 0 : i32
    %c0_i32_0 = arith.constant 0 : i32
    %c0_i32_1 = arith.constant 0 : i32
    return %c0_i32, %c0_i32_0 : i32, i32
  }
  func.func @transform_6(%arg0: i32) -> i32 {
    %c0_i32 = arith.constant 0 : i32
    %c0_i32_0 = arith.constant 0 : i32
    return %c0_i32 : i32
  }
  func.func @transform_7(%arg0: i32) -> (i32, i32, i32) {
    %c0_i32 = arith.constant 0 : i32
    %c0_i32_0 = arith.constant 0 : i32
    %c0_i32_1 = arith.constant 0 : i32
    return %arg0, %c0_i32, %c0_i32_0 : i32, i32, i32
  }
}

</mosaic_0001>

<llo_original>
// kernel: critic_forward.1
$region0: #{critic_forward.1}
  #allocation0 [shape = 'u32[]', space=smem, size = 0x4, offset = 0x4, fixed_abs, tag = 'smem constant byte address 0x4 - core index']
  #allocation1 [shape = 'u32[72,128]{1,0:T(1,128)}', space=vmem, size = 0x9000, scoped, tag = 'internal scratch']
  #allocation2 [shape = 'f32[1]{0:T(128)S(6)}', space=smem, size = 0x200, scoped, tag = 'scoped memory for critic_forward.1']
  %s0 = inlined_call_operand.vmem [shape: f32[128,32], index: 0, kind: input, shape index: {}]
  %s1 = inlined_call_operand.hbm [shape: f32[32,128], index: 1, kind: input, shape index: {}]
  %s2 = inlined_call_operand.vmem [shape: f32[1,128], index: 2, kind: input, shape index: {}]
  %s3 = inlined_call_operand.vmem [shape: f32[128,128], index: 3, kind: input, shape index: {}]
  %s4 = inlined_call_operand.vmem [shape: f32[1,128], index: 4, kind: input, shape index: {}]
  %s5 = inlined_call_operand.vmem [shape: f32[1,128], index: 5, kind: input, shape index: {}]
  %s6 = inlined_call_operand.<no memory space> [shape: f32[1], index: 6, kind: input, shape index: {}]
  %s7 = inlined_call_operand.vmem [shape: f32[1,1,128], index: 7, kind: output, shape index: {}]
  %s8 = sld [smem:[#allocation0]]
  $region42: #{critic_forward.1} parent=0
    _
  %s10 = ssub.s32 1, %s8
  %s11 = scalar_select 0, %s10, %s8
  %12 = sst [smem:[#allocation2]] %s6
  $region1: #{critic_forward.1} parent=0
    #allocation3 [shape = 'u8[16384]{0}', space=vmem, size = 0x4000, scoped, tag = 'input window, operand 1, single buffered']
    #allocation4 [shape = 's32[1]{0}', space=sflag, size = 0x4, scoped, tag = 'scoped memory for critic_forward.1']
    %13 = vsyncpa [#allocation4], 0
    // Predicated region
    $region2: #{critic_forward.1} parent=1 // pred_check
      _
    $region3: #{critic_forward.1} parent=1 // pred_check_branch
      %15 = sbr.rel (0) target = $region5
    $region4: #{critic_forward.1} parent=1 // pred_region
      _
    $region5: #{critic_forward.1} parent=1 // pred_fallthru
      _
    // Predicated region
    $region6: #{critic_forward.1} parent=1 // pred_check
      _
    $region7: #{critic_forward.1} parent=1 // pred_check_branch
      %17 = sbr.rel (0) target = $region9
    $region8: #{critic_forward.1} parent=1 // pred_region
      %19 = vsyncadd [#allocation4], 0
      %s20 = sshll.u32 %s1, 4
      %s21 = int_to_ptr.hbm [resolvable:$true] %s20
      %s22 = sshll.u32 [#allocation3], 4
      %s23 = int_to_ptr.vmem [resolvable:$true] %s22
      %28 = dma.hbm_to_vmem [thread:$0]  %s21, 512, %s23, [#allocation4], 128, 128, 8
    $region9: #{critic_forward.1} parent=1 // pred_fallthru
      _
    // Predicated region
    $region10: #{critic_forward.1} parent=1 // pred_check
      _
    $region11: #{critic_forward.1} parent=1 // pred_check_branch
      %30 = sbr.rel (0) target = $region13
    $region12: #{critic_forward.1} parent=1 // pred_region
      _
    $region13: #{critic_forward.1} parent=1 // pred_fallthru
      _
    // Predicated region
    $region14: #{critic_forward.1} parent=1 // pred_check
      _
    $region15: #{critic_forward.1} parent=1 // pred_check_branch
      %32 = sbr.rel (0) target = $region17
    $region16: #{critic_forward.1} parent=1 // pred_region
      _
    $region17: #{critic_forward.1} parent=1 // pred_fallthru
      _
    // Predicated region
    $region18: #{critic_forward.1} parent=1 // pred_check
      _
    $region19: #{critic_forward.1} parent=1 // pred_check_branch
      %34 = sbr.rel (0) target = $region21
    $region20: #{critic_forward.1} parent=1 // pred_region
      _
    $region21: #{critic_forward.1} parent=1 // pred_fallthru
      _
    // Predicated region
    $region22: #{critic_forward.1} parent=1 // pred_check
      _
    $region23: #{critic_forward.1} parent=1 // pred_check_branch
      %36 = sbr.rel (0) target = $region25
    $region24: #{critic_forward.1} parent=1 // pred_region
      _
    $region25: #{critic_forward.1} parent=1 // pred_fallthru
      _
    // Predicated region
    $region26: #{critic_forward.1} parent=1 // pred_check
      _
    $region27: #{critic_forward.1} parent=1 // pred_check_branch
      %38 = sbr.rel (0) target = $region29
    $region28: #{critic_forward.1} parent=1 // pred_region
      _
    $region29: #{critic_forward.1} parent=1 // pred_fallthru
      _
    // Predicated region
    $region30: #{critic_forward.1} parent=1 // pred_check
      _
    $region31: #{critic_forward.1} parent=1 // pred_check_branch
      %40 = sbr.rel (0) target = $region33
    $region32: #{critic_forward.1} parent=1 // pred_region
      %42 = dma.done [#allocation4], 512
    $region33: #{critic_forward.1} parent=1 // pred_fallthru
      _
    %v43 = vld [vmem:[%s0] sm:$0xff]
    %v44 = vld [vmem:[%s0 + $0x8] sm:$0xff]
    %v45 = vld [vmem:[%s0 + $0x10] sm:$0xff]
    %v46 = vld [vmem:[%s0 + $0x18] sm:$0xff]
    %v47 = vld [vmem:[%s0 + $0x20] sm:$0xff]
    %v48 = vld [vmem:[%s0 + $0x28] sm:$0xff]
    %v49 = vld [vmem:[%s0 + $0x30] sm:$0xff]
    %v50 = vld [vmem:[%s0 + $0x38] sm:$0xff]
    %v51 = vld [vmem:[%s0 + $0x40] sm:$0xff]
    %v52 = vld [vmem:[%s0 + $0x48] sm:$0xff]
    %v53 = vld [vmem:[%s0 + $0x50] sm:$0xff]
    %v54 = vld [vmem:[%s0 + $0x58] sm:$0xff]
    %v55 = vld [vmem:[%s0 + $0x60] sm:$0xff]
    %v56 = vld [vmem:[%s0 + $0x68] sm:$0xff]
    %v57 = vld [vmem:[%s0 + $0x70] sm:$0xff]
    %v58 = vld [vmem:[%s0 + $0x78] sm:$0xff]
    %v59 = vld [vmem:[#allocation3] sm:$0xff]
    %v60 = vld [vmem:[#allocation3 + $0x8] sm:$0xff]
    %v61 = vld [vmem:[#allocation3 + $0x10] sm:$0xff]
    %v62 = vld [vmem:[#allocation3 + $0x18] sm:$0xff]
    %v63 = vld [vmem:[%s2] sm:$0x1]
    %v65 = vperm.slane %v63, 0
    %vm67 = vcmask 261120
    %v69 = vsel %vm67, %v43, 0
    %v72 = vsel %vm67, %v44, 0
    %v75 = vsel %vm67, %v45, 0
    %v78 = vsel %vm67, %v46, 0
    %v81 = vsel %vm67, %v47, 0
    %v84 = vsel %vm67, %v48, 0
    %v87 = vsel %vm67, %v49, 0
    %v90 = vsel %vm67, %v50, 0
    %v93 = vsel %vm67, %v51, 0
    %v96 = vsel %vm67, %v52, 0
    %v99 = vsel %vm67, %v53, 0
    %v102 = vsel %vm67, %v54, 0
    %v105 = vsel %vm67, %v55, 0
    %v108 = vsel %vm67, %v56, 0
    %v111 = vsel %vm67, %v57, 0
    %v114 = vsel %vm67, %v58, 0
    %116 = vmatpush.msra.mxu0 0.0
    %117 = vmatpush.msra.mxu0 0.0
    %118 = vmatpush.msra.mxu0 0.0
    %119 = vmatpush.msra.mxu0 0.0
    %120 = vmatpush.msra.mxu0 0.0
    %121 = vmatpush.msra.mxu0 0.0
    %122 = vmatpush.msra.mxu0 0.0
    %123 = vmatpush.msra.mxu0 0.0
    %124 = vmatpush.msra.mxu0 0.0
    %125 = vmatpush.msra.mxu0 0.0
    %126 = vmatpush.msra.mxu0 0.0
    %127 = vmatpush.msra.mxu0 0.0
    %128 = vmatpush.msra.mxu0 %v62
    %129 = vmatpush.msra.mxu0 %v61
    %130 = vmatpush.msra.mxu0 %v60
    %131 = vmatpush.msra.mxu0 %v59
    %132 = vmatmul.f32.gmra.mxu0 %v69
    %v133 = vpop.f32.mrf.mxu0
    %v134 = vadd.f32 %v65, %v133
    %135 = vmatmul.f32.gmra.mxu0 %v72
    %v136 = vpop.f32.mrf.mxu0
    %v137 = vadd.f32 %v65, %v136
    %138 = vmatmul.f32.gmra.mxu0 %v75
    %v139 = vpop.f32.mrf.mxu0
    %v140 = vadd.f32 %v65, %v139
    %141 = vmatmul.f32.gmra.mxu0 %v78
    %v142 = vpop.f32.mrf.mxu0
    %v143 = vadd.f32 %v65, %v142
    %144 = vmatmul.f32.gmra.mxu0 %v81
    %v145 = vpop.f32.mrf.mxu0
    %v146 = vadd.f32 %v65, %v145
    %147 = vmatmul.f32.gmra.mxu0 %v84
    %v148 = vpop.f32.mrf.mxu0
    %v149 = vadd.f32 %v65, %v148
    %150 = vmatmul.f32.gmra.mxu0 %v87
    %v151 = vpop.f32.mrf.mxu0
    %v152 = vadd.f32 %v65, %v151
    %153 = vmatmul.f32.gmra.mxu0 %v90
    %v154 = vpop.f32.mrf.mxu0
    %v155 = vadd.f32 %v65, %v154
    %156 = vmatmul.f32.gmra.mxu0 %v93
    %v157 = vpop.f32.mrf.mxu0
    %v158 = vadd.f32 %v65, %v157
    %159 = vmatmul.f32.gmra.mxu0 %v96
    %v160 = vpop.f32.mrf.mxu0
    %v161 = vadd.f32 %v65, %v160
    %162 = vmatmul.f32.gmra.mxu0 %v99
    %v163 = vpop.f32.mrf.mxu0
    %v164 = vadd.f32 %v65, %v163
    %165 = vmatmul.f32.gmra.mxu0 %v102
    %v166 = vpop.f32.mrf.mxu0
    %v167 = vadd.f32 %v65, %v166
    %168 = vmatmul.f32.gmra.mxu0 %v105
    %v169 = vpop.f32.mrf.mxu0
    %v170 = vadd.f32 %v65, %v169
    %171 = vmatmul.f32.gmra.mxu0 %v108
    %v172 = vpop.f32.mrf.mxu0
    %v173 = vadd.f32 %v65, %v172
    %174 = vmatmul.f32.gmra.mxu0 %v111
    %v175 = vpop.f32.mrf.mxu0
    %v176 = vadd.f32 %v65, %v175
    %177 = vmatmul.f32.gmra.mxu0 %v114
    %v178 = vpop.f32.mrf.mxu0
    %v179 = vadd.f32 %v65, %v178
    %180 = vdwg.mxu0
    %v181 = vmax.f32 %v134, 0.0
    %v182 = vmax.f32 %v137, 0.0
    %v183 = vmax.f32 %v140, 0.0
    %v184 = vmax.f32 %v143, 0.0
    %v185 = vmax.f32 %v146, 0.0
    %v186 = vmax.f32 %v149, 0.0
    %v187 = vmax.f32 %v152, 0.0
    %v188 = vmax.f32 %v155, 0.0
    %v189 = vmax.f32 %v158, 0.0
    %v190 = vmax.f32 %v161, 0.0
    %v191 = vmax.f32 %v164, 0.0
    %v192 = vmax.f32 %v167, 0.0
    %v193 = vmax.f32 %v170, 0.0
    %v194 = vmax.f32 %v173, 0.0
    %v195 = vmax.f32 %v176, 0.0
    %v196 = vmax.f32 %v179, 0.0
    %v197 = vld [vmem:[%s3] sm:$0xff]
    %v198 = vld [vmem:[%s3 + $0x8] sm:$0xff]
    %v199 = vld [vmem:[%s3 + $0x10] sm:$0xff]
    %v200 = vld [vmem:[%s3 + $0x18] sm:$0xff]
    %v201 = vld [vmem:[%s3 + $0x20] sm:$0xff]
    %v202 = vld [vmem:[%s3 + $0x28] sm:$0xff]
    %v203 = vld [vmem:[%s3 + $0x30] sm:$0xff]
    %v204 = vld [vmem:[%s3 + $0x38] sm:$0xff]
    %v205 = vld [vmem:[%s3 + $0x40] sm:$0xff]
    %v206 = vld [vmem:[%s3 + $0x48] sm:$0xff]
    %v207 = vld [vmem:[%s3 + $0x50] sm:$0xff]
    %v208 = vld [vmem:[%s3 + $0x58] sm:$0xff]
    %v209 = vld [vmem:[%s3 + $0x60] sm:$0xff]
    %v210 = vld [vmem:[%s3 + $0x68] sm:$0xff]
    %v211 = vld [vmem:[%s3 + $0x70] sm:$0xff]
    %v212 = vld [vmem:[%s3 + $0x78] sm:$0xff]
    %v213 = vld [vmem:[%s4] sm:$0x1]
    %v215 = vperm.slane %v213, 0
    %217 = vmatpush.msra.mxu0 %v212
    %218 = vmatpush.msra.mxu0 %v211
    %219 = vmatpush.msra.mxu0 %v210
    %220 = vmatpush.msra.mxu0 %v209
    %221 = vmatpush.msra.mxu0 %v208
    %222 = vmatpush.msra.mxu0 %v207
    %223 = vmatpush.msra.mxu0 %v206
    %224 = vmatpush.msra.mxu0 %v205
    %225 = vmatpush.msra.mxu0 %v204
    %226 = vmatpush.msra.mxu0 %v203
    %227 = vmatpush.msra.mxu0 %v202
    %228 = vmatpush.msra.mxu0 %v201
    %229 = vmatpush.msra.mxu0 %v200
    %230 = vmatpush.msra.mxu0 %v199
    %231 = vmatpush.msra.mxu0 %v198
    %232 = vmatpush.msra.mxu0 %v197
    %233 = vmatmul.f32.gmra.mxu0 %v181
    %v234 = vpop.f32.mrf.mxu0
    %v235 = vadd.f32 %v215, %v234
    %236 = vmatmul.f32.gmra.mxu0 %v182
    %v237 = vpop.f32.mrf.mxu0
    %v238 = vadd.f32 %v215, %v237
    %239 = vmatmul.f32.gmra.mxu0 %v183
    %v240 = vpop.f32.mrf.mxu0
    %v241 = vadd.f32 %v215, %v240
    %242 = vmatmul.f32.gmra.mxu0 %v184
    %v243 = vpop.f32.mrf.mxu0
    %v244 = vadd.f32 %v215, %v243
    %245 = vmatmul.f32.gmra.mxu0 %v185
    %v246 = vpop.f32.mrf.mxu0
    %v247 = vadd.f32 %v215, %v246
    %248 = vmatmul.f32.gmra.mxu0 %v186
    %v249 = vpop.f32.mrf.mxu0
    %v250 = vadd.f32 %v215, %v249
    %251 = vmatmul.f32.gmra.mxu0 %v187
    %v252 = vpop.f32.mrf.mxu0
    %v253 = vadd.f32 %v215, %v252
    %254 = vmatmul.f32.gmra.mxu0 %v188
    %v255 = vpop.f32.mrf.mxu0
    %v256 = vadd.f32 %v215, %v255
    %257 = vmatmul.f32.gmra.mxu0 %v189
    %v258 = vpop.f32.mrf.mxu0
    %v259 = vadd.f32 %v215, %v258
    %260 = vmatmul.f32.gmra.mxu0 %v190
    %v261 = vpop.f32.mrf.mxu0
    %v262 = vadd.f32 %v215, %v261
    %263 = vmatmul.f32.gmra.mxu0 %v191
    %v264 = vpop.f32.mrf.mxu0
    %v265 = vadd.f32 %v215, %v264
    %266 = vmatmul.f32.gmra.mxu0 %v192
    %v267 = vpop.f32.mrf.mxu0
    %v268 = vadd.f32 %v215, %v267
    %269 = vmatmul.f32.gmra.mxu0 %v193
    %v270 = vpop.f32.mrf.mxu0
    %v271 = vadd.f32 %v215, %v270
    %272 = vmatmul.f32.gmra.mxu0 %v194
    %v273 = vpop.f32.mrf.mxu0
    %v274 = vadd.f32 %v215, %v273
    %275 = vmatmul.f32.gmra.mxu0 %v195
    %v276 = vpop.f32.mrf.mxu0
    %v277 = vadd.f32 %v215, %v276
    %278 = vmatmul.f32.gmra.mxu0 %v196
    %v279 = vpop.f32.mrf.mxu0
    %v280 = vadd.f32 %v215, %v279
    %281 = vdwg.mxu0
    %v282 = vmax.f32 %v235, 0.0
    %v283 = vmax.f32 %v238, 0.0
    %v284 = vmax.f32 %v241, 0.0
    %v285 = vmax.f32 %v244, 0.0
    %v286 = vmax.f32 %v247, 0.0
    %v287 = vmax.f32 %v250, 0.0
    %v288 = vmax.f32 %v253, 0.0
    %v289 = vmax.f32 %v256, 0.0
    %v290 = vmax.f32 %v259, 0.0
    %v291 = vmax.f32 %v262, 0.0
    %v292 = vmax.f32 %v265, 0.0
    %v293 = vmax.f32 %v268, 0.0
    %v294 = vmax.f32 %v271, 0.0
    %v295 = vmax.f32 %v274, 0.0
    %v296 = vmax.f32 %v277, 0.0
    %v297 = vmax.f32 %v280, 0.0
    %v298 = vld [vmem:[%s5] sm:$0x1]
    %v300 = vperm.slane %v298, 0
    %v302 = vmul.f32 %v282, %v300
    %v303 = vmul.f32 %v283, %v300
    %v304 = vmul.f32 %v284, %v300
    %v305 = vmul.f32 %v285, %v300
    %v306 = vmul.f32 %v286, %v300
    %v307 = vmul.f32 %v287, %v300
    %v308 = vmul.f32 %v288, %v300
    %v309 = vmul.f32 %v289, %v300
    %v310 = vmul.f32 %v290, %v300
    %v311 = vmul.f32 %v291, %v300
    %v312 = vmul.f32 %v292, %v300
    %v313 = vmul.f32 %v293, %v300
    %v314 = vmul.f32 %v294, %v300
    %v315 = vmul.f32 %v295, %v300
    %v316 = vmul.f32 %v296, %v300
    %v317 = vmul.f32 %v297, %v300
    %318 = vadd.xlane.f32.xlu0 %v302
    %v319 = vpop.xlane.xlu0 %318
    %320 = vadd.xlane.f32.xlu0 %v303
    %v321 = vpop.xlane.xlu0 %320
    %322 = vadd.xlane.f32.xlu0 %v304
    %v323 = vpop.xlane.xlu0 %322
    %324 = vadd.xlane.f32.xlu0 %v305
    %v325 = vpop.xlane.xlu0 %324
    %326 = vadd.xlane.f32.xlu0 %v306
    %v327 = vpop.xlane.xlu0 %326
    %328 = vadd.xlane.f32.xlu0 %v307
    %v329 = vpop.xlane.xlu0 %328
    %330 = vadd.xlane.f32.xlu0 %v308
    %v331 = vpop.xlane.xlu0 %330
    %332 = vadd.xlane.f32.xlu0 %v309
    %v333 = vpop.xlane.xlu0 %332
    %334 = vadd.xlane.f32.xlu0 %v310
    %v335 = vpop.xlane.xlu0 %334
    %336 = vadd.xlane.f32.xlu0 %v311
    %v337 = vpop.xlane.xlu0 %336
    %338 = vadd.xlane.f32.xlu0 %v312
    %v339 = vpop.xlane.xlu0 %338
    %340 = vadd.xlane.f32.xlu0 %v313
    %v341 = vpop.xlane.xlu0 %340
    %342 = vadd.xlane.f32.xlu0 %v314
    %v343 = vpop.xlane.xlu0 %342
    %344 = vadd.xlane.f32.xlu0 %v315
    %v345 = vpop.xlane.xlu0 %344
    %346 = vadd.xlane.f32.xlu0 %v316
    %v347 = vpop.xlane.xlu0 %346
    %348 = vadd.xlane.f32.xlu0 %v317
    %v349 = vpop.xlane.xlu0 %348
    %s350 = sld [smem:[#allocation2]]
    %v351 = vstv %s350
    %v352 = vadd.f32 %v319, %v351
    %v353 = vadd.f32 %v321, %v351
    %v354 = vadd.f32 %v323, %v351
    %v355 = vadd.f32 %v325, %v351
    %v356 = vadd.f32 %v327, %v351
    %v357 = vadd.f32 %v329, %v351
    %v358 = vadd.f32 %v331, %v351
    %v359 = vadd.f32 %v333, %v351
    %v360 = vadd.f32 %v335, %v351
    %v361 = vadd.f32 %v337, %v351
    %v362 = vadd.f32 %v339, %v351
    %v363 = vadd.f32 %v341, %v351
    %v364 = vadd.f32 %v343, %v351
    %v365 = vadd.f32 %v345, %v351
    %v366 = vadd.f32 %v347, %v351
    %v367 = vadd.f32 %v349, %v351
    %v384 = vlaneseq
    %v385 = vand.u32 %v384, 127
    %v386 = vperm.slane %v352, %v385
    %v387 = vadd.s32 %v385, 4294967288
    %v388 = vperm.slane %v353, %v387
    %vm389 = vcmask 130112
    %v390 = vsel %vm389, %v388, %v386
    %v391 = vadd.s32 %v385, 4294967280
    %v392 = vperm.slane %v354, %v391
    %vm393 = vcmask 195712
    %v394 = vsel %vm393, %v392, %v390
    %v395 = vadd.s32 %v385, 4294967272
    %v396 = vperm.slane %v355, %v395
    %vm397 = vcmask 261312
    %v398 = vsel %vm397, %v396, %v394
    %v399 = vadd.s32 %v385, 4294967264
    %v400 = vperm.slane %v356, %v399
    %vm401 = vcmask 326912
    %v402 = vsel %vm401, %v400, %v398
    %v403 = vadd.s32 %v385, 4294967256
    %v404 = vperm.slane %v357, %v403
    %vm405 = vcmask 392512
    %v406 = vsel %vm405, %v404, %v402
    %v407 = vadd.s32 %v385, 4294967248
    %v408 = vperm.slane %v358, %v407
    %vm409 = vcmask 458112
    %v410 = vsel %vm409, %v408, %v406
    %v411 = vadd.s32 %v385, 4294967240
    %v412 = vperm.slane %v359, %v411
    %vm413 = vcmask 523712
    %v414 = vsel %vm413, %v412, %v410
    %v415 = vadd.s32 %v385, 4294967232
    %v416 = vperm.slane %v360, %v415
    %vm417 = vcmask 589312
    %v418 = vsel %vm417, %v416, %v414
    %v419 = vadd.s32 %v385, 4294967224
    %v420 = vperm.slane %v361, %v419
    %vm421 = vcmask 654912
    %v422 = vsel %vm421, %v420, %v418
    %v423 = vadd.s32 %v385, 4294967216
    %v424 = vperm.slane %v362, %v423
    %vm425 = vcmask 720512
    %v426 = vsel %vm425, %v424, %v422
    %v427 = vadd.s32 %v385, 4294967208
    %v428 = vperm.slane %v363, %v427
    %vm429 = vcmask 786112
    %v430 = vsel %vm429, %v428, %v426
    %v431 = vadd.s32 %v385, 4294967200
    %v432 = vperm.slane %v364, %v431
    %vm433 = vcmask 851712
    %v434 = vsel %vm433, %v432, %v430
    %v435 = vadd.s32 %v385, 4294967192
    %v436 = vperm.slane %v365, %v435
    %vm437 = vcmask 917312
    %v438 = vsel %vm437, %v436, %v434
    %v439 = vadd.s32 %v385, 4294967184
    %v440 = vperm.slane %v366, %v439
    %vm441 = vcmask 982912
    %v442 = vsel %vm441, %v440, %v438
    %v443 = vadd.s32 %v385, 4294967176
    %v444 = vperm.slane %v367, %v443
    %vm445 = vcmask 1048512
    %v446 = vsel %vm445, %v444, %v442
    %448 = vst [vmem:[%s7] sm:$0x1] %v446
    // Predicated region
    $region34: #{critic_forward.1} parent=1 // pred_check
      _
    $region35: #{critic_forward.1} parent=1 // pred_check_branch
      %450 = sbr.rel (0) target = $region37
    $region36: #{critic_forward.1} parent=1 // pred_region
      _
    $region37: #{critic_forward.1} parent=1 // pred_fallthru
      _
    // Predicated region
    $region38: #{critic_forward.1} parent=1 // pred_check
      _
    $region39: #{critic_forward.1} parent=1 // pred_check_branch
      %452 = sbr.rel (0) target = $region41
    $region40: #{critic_forward.1} parent=1 // pred_region
      _
    $region41: #{critic_forward.1} parent=1 // pred_fallthru
      _
    %453 = vsyncpa [#allocation4], 1

</llo_original>
